<compile_context>
chip_gen: v5e
topology: v5e:2x2
jax: 0.10.0
libtpu: 0.0.40
codegen_flags: <defaults>
</compile_context>

<pallas_src>
import jax
import jax.numpy as jnp
import numpy as np
from jax.experimental import pallas as pl
from jax.experimental.pallas import tpu as pltpu


# ---------------------------------------------------------------------------
# Chunked HBM -> HBM DMA copy kernel (no VMEM staging).
# ---------------------------------------------------------------------------
_LANE_CANDIDATES = (2048, 1024, 512, 256, 128)
_MIN_CHUNK_BYTES = 1 << 20   # >= 1 MiB per DMA chunk: per-DMA setup cost is negligible
_MAX_CHUNKS = 8              # spread large copies across multiple DMA issues


def _chunk_bounds(m: int, row_bytes: int):
    """Split `m` rows into <=_MAX_CHUNKS chunks of >=_MIN_CHUNK_BYTES each."""
    total_bytes = m * row_bytes
    n = max(1, min(_MAX_CHUNKS, m, total_bytes // _MIN_CHUNK_BYTES))
    base, rem = divmod(m, n)
    bounds, start = [], 0
    for i in range(n):
        size = base + (1 if i < rem else 0)
        bounds.append((start, size))
        start += size
    return tuple(bounds)


def _make_dma_copy_kernel(bounds):
    """Kernel: start all HBM->HBM chunk DMAs, then wait on all of them.

    `bounds` is a tuple of static (row_start, row_count) pairs for a 2-D slab,
    or None for a single whole-ref copy (ragged element counts).
    """

    def kernel(x_ref, o_ref, sems):
        copies = []
        if bounds is None:
            cp = pltpu.make_async_copy(x_ref, o_ref, sems.at[0])
            cp.start()
            copies.append(cp)
        else:
            for idx, (start, size) in enumerate(bounds):
                cp = pltpu.make_async_copy(
                    x_ref.at[pl.ds(start, size)],
                    o_ref.at[pl.ds(start, size)],
                    sems.at[idx],
                )
                cp.start()
                copies.append(cp)
        for cp in copies:
            cp.wait()

    return kernel


def _pallas_identity(x):
    """Identity copy of `x` via chunked HBM->HBM DMAs inside a Pallas kernel."""
    orig_shape = x.shape
    total = int(np.prod(orig_shape)) if x.ndim else 1
    if x.ndim == 0 or total == 0:
        return x  # nothing for the DMA kernel to do

    itemsize = jnp.dtype(x.dtype).itemsize

    lane = next((c for c in _LANE_CANDIDATES if total % c == 0), None)
    if lane is not None:
        m = total // lane
        x_view = x.reshape(m, lane)            # contiguous reshape: free bitcast
        bounds = _chunk_bounds(m, lane * itemsize)
    else:
        # Ragged element count: one whole-ref DMA in the original shape.
        # No pad / slice wrapper ops -> exactly one HBM read + one HBM write.
        x_view = x
        bounds = None

    num_sems = len(bounds) if bounds is not None else 1

    out = pl.pallas_call(
        _make_dma_copy_kernel(bounds),
        out_shape=jax.ShapeDtypeStruct(x_view.shape, x_view.dtype),
        in_specs=[pl.BlockSpec(memory_space=pl.ANY)],
        out_specs=pl.BlockSpec(memory_space=pl.ANY),
        scratch_shapes=[pltpu.SemaphoreType.DMA((num_sems,))],
        cost_estimate=pl.CostEstimate(
            flops=0,
            transcendentals=0,
            bytes_accessed=2 * total * itemsize,
        ),
    )(x_view)

    return out.reshape(orig_shape) if out.shape != orig_shape else out


# ---------------------------------------------------------------------------
# StopGradient: forward = identity, backward = cotangent * coeff.
# coeff is a traced scalar so new warmup values don't retrace under jit.
# ---------------------------------------------------------------------------
@jax.custom_vjp
def stop_gradient_forward(x, coeff):
    del coeff  # forward is exact identity
    return _pallas_identity(x)


def _sg_fwd(x, coeff):
    return _pallas_identity(x), coeff


def _sg_bwd(coeff, g):
    dx = (g * coeff).astype(g.dtype)
    return dx, jnp.zeros_like(coeff)


stop_gradient_forward.defvjp(_sg_fwd, _sg_bwd)


def _custom_sigmoid(x, a, b, min_value, max_value):
    sigmoid_value = 1.0 / (1.0 + np.exp(-a * (x - b)))
    return min_value + sigmoid_value * (max_value - min_value)


class StopGradientLayer:
    """JAX/Pallas port of the PyTorch StopGradientLayer.

    Forward: identity (chunked HBM->HBM DMA Pallas kernel).
    Backward: gradient scaled by the warmup-sigmoid coeff via jax.custom_vjp.
    """

    def __init__(self, warmup_steps: int):
        self.warmup_steps = warmup_steps
        self.step = 0
        self.func = lambda t: _custom_sigmoid(t, 10, 0.5, 1.0, 0.01)

    def __call__(self, x):
        # TODO(synk): the Python-side step counter does not advance per traced
        # call under jax.jit; thread `step` (or coeff) in as an explicit traced
        # argument when jitting a training loop.
        coeff = jnp.asarray(self.func(self.step / self.warmup_steps), dtype=jnp.float32)
        self.step += 1
        return stop_gradient_forward(x, coeff)


if __name__ == "__main__":
    key = jax.random.PRNGKey(0)
    x = jax.random.normal(key, (2, 4, 16, 16), dtype=jnp.float32)  # NCHW

    layer = StopGradientLayer(warmup_steps=10)
    y = jax.block_until_ready(layer(x))

    assert y.shape == x.shape and y.dtype == x.dtype
    np.testing.assert_allclose(np.asarray(y), np.asarray(x), rtol=0, atol=0)

    # Backward semantics check: d/dx sum(StopGradient(x, coeff)) == coeff.
    coeff1 = jnp.float32(layer.func(layer.step / layer.warmup_steps))
    g = jax.grad(lambda v: jnp.sum(stop_gradient_forward(v, coeff1)))(x)
    g = jax.block_until_ready(g)
    np.testing.assert_allclose(
        np.asarray(g),
        np.full(x.shape, float(coeff1), dtype=np.float32),
        rtol=1e-6,
        atol=0,
    )

    print("KERNEL_OK")
</pallas_src>

<mosaic_0001>
module attributes {stable_mosaic.version = 11 : i64} {
  func.func @kernel(%arg0: memref<1x2048xf32, #tpu.memory_space<any>>, %arg1: memref<1x2048xf32, #tpu.memory_space<any>>, %arg2: memref<1x!tpu.dma_semaphore, #tpu.memory_space<semaphore_mem>>) attributes {dimension_semantics = [], scalar_prefetch = 0 : i64, scratch_operands = 1 : i64, tpu.core_type = #tpu.core_type<tc>} {
    %c0_i32 = arith.constant 0 : i32
    %c0_i32_0 = arith.constant 0 : i32
    %c0_i32_1 = arith.constant 0 : i32
    %0 = tpu.memref_slice %arg0[%c0_i32_0, %c0_i32_1] : memref<1x2048xf32, #tpu.memory_space<any>> -> memref<1x2048xf32, #tpu.memory_space<any>>
    %c0_i32_2 = arith.constant 0 : i32
    %c0_i32_3 = arith.constant 0 : i32
    %1 = tpu.memref_slice %arg1[%c0_i32_2, %c0_i32_3] : memref<1x2048xf32, #tpu.memory_space<any>> -> memref<1x2048xf32, #tpu.memory_space<any>>
    %2 = tpu.memref_slice %arg2[%c0_i32] : memref<1x!tpu.dma_semaphore, #tpu.memory_space<semaphore_mem>> -> memref<1x!tpu.dma_semaphore, #tpu.memory_space<semaphore_mem>>
    %3 = tpu.memref_squeeze %2 : memref<1x!tpu.dma_semaphore, #tpu.memory_space<semaphore_mem>> -> memref<!tpu.dma_semaphore, #tpu.memory_space<semaphore_mem>>
    tpu.enqueue_dma source(%0 : memref<1x2048xf32, #tpu.memory_space<any>>) target(%1 : memref<1x2048xf32, #tpu.memory_space<any>>) target_semaphore(%3 : memref<!tpu.dma_semaphore, #tpu.memory_space<semaphore_mem>>)
    %c0_i32_4 = arith.constant 0 : i32
    %c0_i32_5 = arith.constant 0 : i32
    %c0_i32_6 = arith.constant 0 : i32
    %4 = tpu.memref_slice %arg0[%c0_i32_5, %c0_i32_6] : memref<1x2048xf32, #tpu.memory_space<any>> -> memref<1x2048xf32, #tpu.memory_space<any>>
    %c0_i32_7 = arith.constant 0 : i32
    %c0_i32_8 = arith.constant 0 : i32
    %5 = tpu.memref_slice %arg1[%c0_i32_7, %c0_i32_8] : memref<1x2048xf32, #tpu.memory_space<any>> -> memref<1x2048xf32, #tpu.memory_space<any>>
    %6 = tpu.memref_slice %arg2[%c0_i32_4] : memref<1x!tpu.dma_semaphore, #tpu.memory_space<semaphore_mem>> -> memref<1x!tpu.dma_semaphore, #tpu.memory_space<semaphore_mem>>
    %7 = tpu.memref_squeeze %6 : memref<1x!tpu.dma_semaphore, #tpu.memory_space<semaphore_mem>> -> memref<!tpu.dma_semaphore, #tpu.memory_space<semaphore_mem>>
    tpu.wait_dma2 semaphore(%7 : memref<!tpu.dma_semaphore, #tpu.memory_space<semaphore_mem>>) src(%4 : memref<1x2048xf32, #tpu.memory_space<any>>) dst(%5 : memref<1x2048xf32, #tpu.memory_space<any>>)
    return
  }
}

</mosaic_0001>

<llo_original>
// kernel: tpu_custom_call.1
$region0: #{tpu_custom_call.1}
  #allocation0 [shape = 'u32[]', space=smem, size = 0x4, offset = 0x4, fixed_abs, tag = 'smem constant byte address 0x4 - core index']
  #allocation1 [shape = 'u32[72,128]{1,0:T(1,128)}', space=vmem, size = 0x9000, scoped, tag = 'internal scratch']
  #allocation2 [shape = 's32[1]{0}', space=sflag, size = 0x4, scoped, tag = 'scratch operand']
  #allocation3 [shape = 's32[]', space=sflag, size = 0x4, offset = 0, fixed_abs, tag = 'sflag constant byte address 0x0 - dummy sync flag']
  #allocation4 [shape = 'u32[0]{0}', space=smem, size = 0, offset = 0, fixed_abs, tag = 'smem constant byte address 0x0 - null']
  %s0 = inlined_call_operand.hbm [shape: f32[1,2048], index: 0, kind: input, shape index: {}]
  %s1 = inlined_call_operand.hbm [shape: f32[1,2048], index: 1, kind: output, shape index: {}]
  %s2 = sld [smem:[#allocation0]]
  $region2: #{tpu_custom_call.1} parent=0
    _
  %s4 = ssub.s32 1, %s2
  %s5 = scalar_select 0, %s4, %s2
  %s7 = sshll.u32 1, 14
  %s8 = sxor.u32 4294967295, %s7
  %s10 = sshll.u32 %s0, 4
  %s11 = int_to_ptr.hbm [resolvable:$true] %s10
  %s12 = sshll.u32 %s1, 4
  %s13 = int_to_ptr.hbm [resolvable:$true] %s12
  %16 = dma.general %s11, 256, %s13, [#allocation2], [#allocation3], [#allocation4], 0, 0
  %s17 = smul.u32 1, 16
  %s18 = sshll.u32 %s17, 4
  %19 = dma.done [#allocation2], %s18
  %20 = vsyncmov [#allocation2]
  %s21 = vpop.sfrf %20
  %p22 = scmp.eq.s32.totalorder %s21, 0
  %p23 = pneg %p22
  %25 = shalt.err (%p23)

</llo_original>
